<compile_context>
chip_gen: v5e
topology: v5e:2x2
jax: 0.10.0
libtpu: 0.0.40
codegen_flags: <defaults>
</compile_context>

<pallas_src>
import jax
import jax.numpy as jnp
from jax.experimental import pallas as pl
from jax.experimental.pallas import tpu as pltpu

_LANES = 128
_MAX_BC = 1024          # lane-dense slab width (8 lane-blocks)
_MAX_BR = 512           # rows per tile -> 512*1024*4B = 2 MiB per f32 input tile
_NSPLIT = 2             # leading "parallel" grid axis (v7x 2-TensorCore split)


def _round_up(x, m):
    return (x + m - 1) // m * m


def _bce_kernel(x_ref, t_ref, o_ref, acc_ref):
    i = pl.program_id(1)

    @pl.when(i == 0)
    def _init():
        acc_ref[...] = jnp.zeros_like(acc_ref)

    x = x_ref[...].astype(jnp.float32)
    t = t_ref[...].astype(jnp.float32)

    # Stable fused BCE-with-logits (2 EUP transcendentals / element):
    #   -[t*log(sigmoid(x)) + (1-t)*log(1-sigmoid(x))]
    #     = max(x, 0) - x*t + log(1 + exp(-|x|))
    # The (x=1000, t=1) padding contributes exactly 0.0.
    elem = jnp.maximum(x, 0.0) - x * t + jnp.log(1.0 + jnp.exp(-jnp.abs(x)))

    acc_ref[...] += elem   # pure VPU adds in the steady state

    @pl.when(i == pl.num_programs(1) - 1)
    def _finalize():
        s = jnp.sum(acc_ref[...])                       # one-time XLU reduce
        o_ref[...] = jnp.full(o_ref.shape, s, jnp.float32)


@jax.jit
def bce_with_logits_loss(logits: jax.Array, target: jax.Array) -> jax.Array:
    """Mean BCE-with-logits loss (scalar float32); matches CustomBCEWithLogitsLoss."""
    assert logits.shape == target.shape
    total = logits.size

    x = logits.reshape(-1)
    t = target.reshape(-1)

    # Sublane granularity of the narrowest input dtype (f32->8, bf16->16, i8->32).
    min_itemsize = min(jnp.dtype(logits.dtype).itemsize,
                       jnp.dtype(target.dtype).itemsize)
    sub = max(8, 32 // int(min_itemsize))

    # Lane-dense slab + tile sizing (adapted down for small inputs).
    bc = _MAX_BC if total >= _MAX_BC else _LANES
    rows = pl.cdiv(total, bc)
    br = min(_MAX_BR, _round_up(rows, sub))
    rows_padded = _round_up(rows, br * _NSPLIT)
    padded = rows_padded * bc

    pad = padded - total
    if pad:
        # (x=+1000, t=1) -> stable loss contribution is exactly 0: no masking.
        x = jnp.concatenate([x, jnp.full((pad,), 1000.0, x.dtype)])
        t = jnp.concatenate([t, jnp.full((pad,), 1.0, t.dtype)])

    x2 = x.reshape(rows_padded, bc)
    t2 = t.reshape(rows_padded, bc)

    nblocks = rows_padded // br
    nb_per_split = nblocks // _NSPLIT

    in_map = lambda c, i: (c * nb_per_split + i, 0)

    out = pl.pallas_call(
        _bce_kernel,
        out_shape=jax.ShapeDtypeStruct((_NSPLIT * 8, _LANES), jnp.float32),
        grid_spec=pltpu.PrefetchScalarGridSpec(
            num_scalar_prefetch=0,
            grid=(_NSPLIT, nb_per_split),
            in_specs=[
                pl.BlockSpec((br, bc), in_map),
                pl.BlockSpec((br, bc), in_map),
            ],
            out_specs=pl.BlockSpec((8, _LANES), lambda c, i: (c, 0)),
            scratch_shapes=[pltpu.VMEM((br, bc), jnp.float32)],
        ),
        compiler_params=pltpu.CompilerParams(
            # Leading axis parallel -> the two halves of the reduction can run
            # on both TensorCores of a v7x chip; the reduction axis stays
            # sequential (revisited accumulator/output).
            dimension_semantics=("parallel", "arbitrary")),
    )(x2, t2)

    # One partial sum per split, replicated across its (8,128) output block.
    total_sum = jnp.sum(out[0::8, 0])
    return total_sum / jnp.float32(total)


def _reference(logits, target):
    # Same (naive) math as the PyTorch module, for validation at moderate |x|.
    s = jax.nn.sigmoid(logits.astype(jnp.float32))
    t = target.astype(jnp.float32)
    loss = t * jnp.log(s) + (1.0 - t) * jnp.log(1.0 - s)
    return -jnp.mean(loss)


if __name__ == "__main__":
    key = jax.random.PRNGKey(0)
    k1, k2 = jax.random.split(key)

    # NCHW-like small shapes: batch=2, channels=4, spatial=16x16 -> 2048 elems.
    shape = (2, 4, 16, 16)
    logits = jax.random.normal(k1, shape, dtype=jnp.float32)
    target = (jax.random.uniform(k2, shape) > 0.5).astype(jnp.float32)

    loss = jax.block_until_ready(bce_with_logits_loss(logits, target))
    ref = jax.block_until_ready(_reference(logits, target))
    assert jnp.allclose(loss, ref, atol=1e-5, rtol=1e-5), (loss, ref)
    print("KERNEL_OK")
</pallas_src>

<mosaic_0001>
module attributes {stable_mosaic.version = 11 : i64} {
  func.func @_bce_kernel(%arg0: i32, %arg1: i32, %arg2: memref<8x1024xf32, #tpu.memory_space<vmem>>, %arg3: memref<8x1024xf32, #tpu.memory_space<vmem>>, %arg4: memref<8x128xf32, #tpu.memory_space<vmem>>, %arg5: memref<8x1024xf32, #tpu.memory_space<vmem>>) attributes {dimension_semantics = [#tpu.dimension_semantics<parallel>, #tpu.dimension_semantics<arbitrary>], iteration_bounds = array<i64: 2, 1>, scalar_prefetch = 0 : i64, scratch_operands = 1 : i64, tpu.core_type = #tpu.core_type<tc>, window_params = [{transform_indices = @transform_0, window_bounds = array<i64: 8, 1024>}, {transform_indices = @transform_1, window_bounds = array<i64: 8, 1024>}, {transform_indices = @transform_2, window_bounds = array<i64: 8, 128>}]} {
    %c0_i32 = arith.constant 0 : i32
    %0 = arith.cmpi eq, %arg1, %c0_i32 : i32
    %1 = arith.extui %0 : i1 to i32
    %c0_i32_0 = arith.constant 0 : i32
    %2 = arith.cmpi ne, %1, %c0_i32_0 : i32
    scf.if %2 {
      %cst_12 = arith.constant 0.000000e+00 : f32
      %23 = vector.broadcast %cst_12 : f32 to vector<8x1024xf32>
      %c0_13 = arith.constant 0 : index
      %c0_14 = arith.constant 0 : index
      %24 = vector.load %arg5[%c0_13, %c0_14] : memref<8x1024xf32, #tpu.memory_space<vmem>>, vector<8x1024xf32>
      tpu.vector_store %arg5[%c0_13, %c0_14], %23 {strides = array<i32>} : memref<8x1024xf32, #tpu.memory_space<vmem>>, vector<8x1024xf32>,
    } else {
    }
    %c0 = arith.constant 0 : index
    %c0_1 = arith.constant 0 : index
    %3 = vector.load %arg2[%c0, %c0_1] : memref<8x1024xf32, #tpu.memory_space<vmem>>, vector<8x1024xf32>
    %c0_2 = arith.constant 0 : index
    %c0_3 = arith.constant 0 : index
    %4 = vector.load %arg3[%c0_2, %c0_3] : memref<8x1024xf32, #tpu.memory_space<vmem>>, vector<8x1024xf32>
    %cst = arith.constant 0.000000e+00 : f32
    %5 = vector.broadcast %cst : f32 to vector<8x1024xf32>
    %6 = arith.maximumf %3, %5 : vector<8x1024xf32>
    %7 = arith.mulf %3, %4 : vector<8x1024xf32>
    %8 = arith.subf %6, %7 : vector<8x1024xf32>
    %9 = math.absf %3 : vector<8x1024xf32>
    %cst_4 = arith.constant 0.000000e+00 : f32
    %10 = vector.broadcast %cst_4 : f32 to vector<8x1024xf32>
    %11 = arith.subf %10, %9 : vector<8x1024xf32>
    %12 = math.exp %11 : vector<8x1024xf32>
    %cst_5 = arith.constant 1.000000e+00 : f32
    %13 = vector.broadcast %cst_5 : f32 to vector<8x1024xf32>
    %14 = arith.addf %13, %12 : vector<8x1024xf32>
    %15 = math.log %14 : vector<8x1024xf32>
    %16 = arith.addf %8, %15 : vector<8x1024xf32>
    %c0_6 = arith.constant 0 : index
    %c0_7 = arith.constant 0 : index
    %17 = vector.load %arg5[%c0_6, %c0_7] : memref<8x1024xf32, #tpu.memory_space<vmem>>, vector<8x1024xf32>
    %18 = arith.addf %17, %16 : vector<8x1024xf32>
    %c0_8 = arith.constant 0 : index
    %c0_9 = arith.constant 0 : index
    %19 = vector.load %arg5[%c0_8, %c0_9] : memref<8x1024xf32, #tpu.memory_space<vmem>>, vector<8x1024xf32>
    tpu.vector_store %arg5[%c0_8, %c0_9], %18 {strides = array<i32>} : memref<8x1024xf32, #tpu.memory_space<vmem>>, vector<8x1024xf32>,
    %c0_i32_10 = arith.constant 0 : i32
    %20 = arith.cmpi eq, %arg1, %c0_i32_10 : i32
    %21 = arith.extui %20 : i1 to i32
    %c0_i32_11 = arith.constant 0 : i32
    %22 = arith.cmpi ne, %21, %c0_i32_11 : i32
    scf.if %22 {
      %c0_12 = arith.constant 0 : index
      %c0_13 = arith.constant 0 : index
      %23 = vector.load %arg5[%c0_12, %c0_13] : memref<8x1024xf32, #tpu.memory_space<vmem>>, vector<8x1024xf32>
      %24 = vector.shape_cast %23 : vector<8x1024xf32> to vector<1x8x1024xf32>
      %cst_14 = arith.constant dense<0.000000e+00> : vector<1xf32>
      %25 = vector.multi_reduction <add>, %24, %cst_14 [1, 2] : vector<1x8x1024xf32> to vector<1xf32>
      %26 = vector.shape_cast %25 : vector<1xf32> to vector<1x1x1xf32>
      %27 = vector.extract %26[0, 0, 0] : f32 from vector<1x1x1xf32>
      %28 = vector.broadcast %27 : f32 to vector<8x128xf32>
      %c0_15 = arith.constant 0 : index
      %c0_16 = arith.constant 0 : index
      %29 = vector.load %arg4[%c0_15, %c0_16] : memref<8x128xf32, #tpu.memory_space<vmem>>, vector<8x128xf32>
      tpu.vector_store %arg4[%c0_15, %c0_16], %28 {strides = array<i32>} : memref<8x128xf32, #tpu.memory_space<vmem>>, vector<8x128xf32>,
    } else {
    }
    return
  }
  func.func @transform_0(%arg0: i32, %arg1: i32) -> (i32, i32) {
    %c1_i32 = arith.constant 1 : i32
    %0 = arith.muli %arg0, %c1_i32 : i32
    %1 = arith.addi %0, %arg1 : i32
    %c0_i32 = arith.constant 0 : i32
    %c0_i32_0 = arith.constant 0 : i32
    return %1, %c0_i32 : i32, i32
  }
  func.func @transform_1(%arg0: i32, %arg1: i32) -> (i32, i32) {
    %c1_i32 = arith.constant 1 : i32
    %0 = arith.muli %arg0, %c1_i32 : i32
    %1 = arith.addi %0, %arg1 : i32
    %c0_i32 = arith.constant 0 : i32
    %c0_i32_0 = arith.constant 0 : i32
    return %1, %c0_i32 : i32, i32
  }
  func.func @transform_2(%arg0: i32, %arg1: i32) -> (i32, i32) {
    %c0_i32 = arith.constant 0 : i32
    %c0_i32_0 = arith.constant 0 : i32
    return %arg0, %c0_i32 : i32, i32
  }
}

</mosaic_0001>

<llo_original>
// kernel: bce_with_logits_loss.1
$region0: #{bce_with_logits_loss.1}
  #allocation0 [shape = 'u32[]', space=smem, size = 0x4, offset = 0x4, fixed_abs, tag = 'smem constant byte address 0x4 - core index']
  #allocation1 [shape = 'u32[72,128]{1,0:T(1,128)}', space=vmem, size = 0x9000, scoped, tag = 'internal scratch']
  #allocation2 [shape = 'f32[8,1024]{1,0:T(8,128)}', space=vmem, size = 0x8000, scoped, tag = 'scratch operand']
  %s0 = inlined_call_operand.vmem [shape: f32[16,1024], index: 0, kind: input, shape index: {}]
  %s1 = inlined_call_operand.vmem [shape: f32[16,1024], index: 1, kind: input, shape index: {}]
  %s2 = inlined_call_operand.vmem [shape: f32[16,128], index: 2, kind: output, shape index: {}]
  %s3 = sld [smem:[#allocation0]]
  $region49: #{bce_with_logits_loss.1} parent=0
    _
  %s5 = ssub.s32 1, %s3
  %s6 = scalar_select 0, %s5, %s3
  loop: start=0, step=1, limit=4
  $region2: #{bce_with_logits_loss.1} parent=0 // loop_pre_header
    _
  $region3: #{bce_with_logits_loss.1} parent=0 // loop_header
    %s8 = sphi 0, %s12
    %p9 = scmp.ge.s32.totalorder %s8, 4
    %s15 = sphi 0, %s27
    %s16 = sphi 0, %s23
    %s17 = sphi 0, %s15
    %s18 = sphi 0, %s16
    %s19 = sphi 0, %s17
    %s20 = sphi 0, %s18
    %s32 = sphi 0, %s34
    %s35 = sphi 0, %s32
    %s36 = sphi 0, %s35
    %s52 = sphi 0, %s36
    %s60 = sphi 0, %s62
    %s63 = sphi 0, %s60
    %s64 = sphi 0, %s63
    %s80 = sphi 0, %s64
    %s86 = sphi 0, %s88
    %s89 = sphi 0, %s86
    %s90 = sphi 0, %s89
    %s106 = sphi 0, %s90
  $region4: #{bce_with_logits_loss.1} parent=0 // loop_header_branch
    %11 = sbr.rel (%p9) target = $region8
  $region5: #{bce_with_logits_loss.1} parent=0 // loop_body
    %s13 = ssub.s32 %s8, 1
    %s14 = ssub.s32 %s8, 2
    %s21 = sadd.s32 1, %s16
    %p22 = scmp.ge.s32.totalorder %s21, 1
    %s23 = scalar_select %p22, 0, %s21
    %s24 = sadd.s32 1, %s15
    %s25 = scalar_select %p22, %s24, %s15
    %p26 = scmp.ge.s32.totalorder %s25, 2
    %s27 = scalar_select %p26, 0, %s25
    %s28 = sadd.s32 %s15, %s16
    %s29 = sadd.s32 %s27, %s23
    %s30 = ssub.s32 %s28, %s29
    %p31 = scmp.eq.s32.totalorder %s30, 0
    %s33 = sadd.s32 %s32, 1
    %s34 = scalar_select %p31, %s32, %s33
    %p37 = pneg %p31
    %p38 = scmp.eq.s32.totalorder %s8, 1
    %p39 = por %p37, %p38
    %p40 = scmp.ne.s32.totalorder %s32, %s35
    %p41 = scmp.eq.s32.totalorder %s8, 0
    %p42 = por %p40, %p41
    %p43 = scmp.ne.s32.totalorder %s32, %s35
    %p44 = scmp.eq.s32.totalorder %s13, 1
    %p45 = por %p43, %p44
    %p46 = scmp.ne.s32.totalorder %s35, %s36
    %p47 = scmp.eq.s32.totalorder %s13, 0
    %p48 = por %p46, %p47
    %p49 = scmp.ne.s32.totalorder %s35, %s36
    %p50 = scmp.eq.s32.totalorder %s14, 1
    %p51 = por %p49, %p50
    %p53 = scmp.ne.s32.totalorder %s36, %s52
    %p54 = scmp.eq.s32.totalorder %s14, 0
    %p55 = por %p53, %p54
    %s56 = sadd.s32 %s15, %s16
    %s57 = sadd.s32 %s27, %s23
    %s58 = ssub.s32 %s56, %s57
    %p59 = scmp.eq.s32.totalorder %s58, 0
    %s61 = sadd.s32 %s60, 1
    %s62 = scalar_select %p59, %s60, %s61
    %p65 = pneg %p59
    %p66 = scmp.eq.s32.totalorder %s8, 1
    %p67 = por %p65, %p66
    %p68 = scmp.ne.s32.totalorder %s60, %s63
    %p69 = scmp.eq.s32.totalorder %s8, 0
    %p70 = por %p68, %p69
    %p71 = scmp.ne.s32.totalorder %s60, %s63
    %p72 = scmp.eq.s32.totalorder %s13, 1
    %p73 = por %p71, %p72
    %p74 = scmp.ne.s32.totalorder %s63, %s64
    %p75 = scmp.eq.s32.totalorder %s13, 0
    %p76 = por %p74, %p75
    %p77 = scmp.ne.s32.totalorder %s63, %s64
    %p78 = scmp.eq.s32.totalorder %s14, 1
    %p79 = por %p77, %p78
    %p81 = scmp.ne.s32.totalorder %s64, %s80
    %p82 = scmp.eq.s32.totalorder %s14, 0
    %p83 = por %p81, %p82
    %s84 = ssub.s32 %s15, %s27
    %p85 = scmp.eq.s32.totalorder %s84, 0
    %s87 = sadd.s32 %s86, 1
    %s88 = scalar_select %p85, %s86, %s87
    %p91 = pneg %p85
    %p92 = scmp.eq.s32.totalorder %s8, 1
    %p93 = por %p91, %p92
    %p94 = scmp.ne.s32.totalorder %s86, %s89
    %p95 = scmp.eq.s32.totalorder %s8, 0
    %p96 = por %p94, %p95
    %p97 = scmp.ne.s32.totalorder %s86, %s89
    %p98 = scmp.eq.s32.totalorder %s13, 1
    %p99 = por %p97, %p98
    %p100 = scmp.ne.s32.totalorder %s89, %s90
    %p101 = scmp.eq.s32.totalorder %s13, 0
    %p102 = por %p100, %p101
    %p103 = scmp.ne.s32.totalorder %s89, %s90
    %p104 = scmp.eq.s32.totalorder %s14, 1
    %p105 = por %p103, %p104
    %p107 = scmp.ne.s32.totalorder %s90, %s106
    %p108 = scmp.eq.s32.totalorder %s14, 0
    %p109 = por %p107, %p108
    %p110 = scmp.le.s32.totalorder 1, %s8
    %p111 = scmp.lt.s32.totalorder %s8, 3
    %p112 = pnand %p110, %p111
    %p113 = pneg %p112
    // Predicated region
    $region9: #{bce_with_logits_loss.1} parent=5 // pred_check
      _
    $region10: #{bce_with_logits_loss.1} parent=5 // pred_check_branch
      %115 = sbr.rel (%p112) target = $region12
    $region11: #{bce_with_logits_loss.1} parent=5 // pred_region
      %s116 = ssub.s32 %s8, 1
    $region12: #{bce_with_logits_loss.1} parent=5 // pred_fallthru
      _
    %p117 = scmp.lt.s32.totalorder %s8, 2
    // Predicated region
    $region13: #{bce_with_logits_loss.1} parent=5 // pred_check
      %p118 = pneg %p117
    $region14: #{bce_with_logits_loss.1} parent=5 // pred_check_branch
      %120 = sbr.rel (%p118) target = $region16
    $region15: #{bce_with_logits_loss.1} parent=5 // pred_region
      // Predicated region
      $region17: #{bce_with_logits_loss.1} parent=15 // pred_check
        %p121 = pneg %p42
      $region18: #{bce_with_logits_loss.1} parent=15 // pred_check_branch
        %123 = sbr.rel (%p121) target = $region20
      $region19: #{bce_with_logits_loss.1} parent=15 // pred_region
        %s124 = sadd.s32 %s15, %s16
        %p125 = scmp.lt.s32.totalorder %s124, 1
        %s126 = scalar_select %p125, %s124, 1
        %s127 = smul.addr %s126, 8
        %s128 = smul.addr %s127, 8
        %s129 = scalar_lea.vmem %s0, %s128
        %s130 = sadd.s32 %s15, %s16
      $region20: #{bce_with_logits_loss.1} parent=15 // pred_fallthru
        _
      // Predicated region
      $region21: #{bce_with_logits_loss.1} parent=15 // pred_check
        %p131 = pneg %p70
      $region22: #{bce_with_logits_loss.1} parent=15 // pred_check_branch
        %133 = sbr.rel (%p131) target = $region24
      $region23: #{bce_with_logits_loss.1} parent=15 // pred_region
        %s134 = sadd.s32 %s15, %s16
        %p135 = scmp.lt.s32.totalorder %s134, 1
        %s136 = scalar_select %p135, %s134, 1
        %s137 = smul.addr %s136, 8
        %s138 = smul.addr %s137, 8
        %s139 = scalar_lea.vmem %s1, %s138
        %s140 = sadd.s32 %s15, %s16
      $region24: #{bce_with_logits_loss.1} parent=15 // pred_fallthru
        _
    $region16: #{bce_with_logits_loss.1} parent=5 // pred_fallthru
      _
    %p141 = scmp.le.s32.totalorder 1, %s8
    %p142 = scmp.lt.s32.totalorder %s8, 3
    %p143 = pnand %p141, %p142
    %p144 = pneg %p143
    // Predicated region
    $region25: #{bce_with_logits_loss.1} parent=5 // pred_check
      _
    $region26: #{bce_with_logits_loss.1} parent=5 // pred_check_branch
      %146 = sbr.rel (%p143) target = $region28
    $region27: #{bce_with_logits_loss.1} parent=5 // pred_region
      %s147 = ssub.s32 %s8, 1
      %s148 = sadd.s32 %s17, %s18
      %p149 = scmp.lt.s32.totalorder %s148, 1
      %s150 = scalar_select %p149, %s148, 1
      %s151 = smul.addr %s150, 8
      %s152 = smul.addr %s151, 8
      %s153 = scalar_lea.vmem %s0, %s152
      %p154 = pneg %p48
      %p155 = pneg %p45
      %s156 = sadd.s32 %s17, %s18
      %p157 = scmp.lt.s32.totalorder %s156, 1
      %s158 = scalar_select %p157, %s156, 1
      %s159 = smul.addr %s158, 8
      %s160 = smul.addr %s159, 8
      %s161 = scalar_lea.vmem %s1, %s160
      %p162 = pneg %p76
      %p163 = pneg %p73
      %p164 = pneg %p102
      %p165 = pneg %p99
      %p166 = scmp.lt.s32.totalorder %s17, 1
      %s167 = scalar_select %p166, %s17, 1
      %s168 = smul.addr %s167, 8
      %s169 = scalar_lea.vmem %s2, %s168
      %s170 = sadd.s32 %s17, %s18
      %p171 = scmp.lt.s32.totalorder %s170, 1
      %s172 = scalar_select %p171, %s170, 1
      %s173 = smul.addr %s172, 8
      %s174 = smul.addr %s173, 8
      %s175 = scalar_lea.vmem %s0, %s174
      %s176 = sadd.s32 %s17, %s18
      %s177 = sadd.s32 %s17, %s18
      %p178 = scmp.lt.s32.totalorder %s177, 1
      %s179 = scalar_select %p178, %s177, 1
      %s180 = smul.addr %s179, 8
      %s181 = smul.addr %s180, 8
      %s182 = scalar_lea.vmem %s1, %s181
      %s183 = sadd.s32 %s17, %s18
      %p184 = scmp.lt.s32.totalorder %s17, 1
      %s185 = scalar_select %p184, %s17, 1
      %s186 = smul.addr %s185, 8
      %s187 = scalar_lea.vmem %s2, %s186
      %p188 = scmp.eq.s32.totalorder %s18, 0
      // Predicated region
      $region29: #{bce_with_logits_loss.1} parent=27 // pred_check
        %p189 = pneg %p188
      $region30: #{bce_with_logits_loss.1} parent=27 // pred_check_branch
        %191 = sbr.rel (%p189) target = $region32
      $region31: #{bce_with_logits_loss.1} parent=27 // pred_region
        %192 = vst [vmem:[#allocation2] sm:$0xff] 0.0
        %193 = vst [vmem:[#allocation2 + $0x8] sm:$0xff] 0.0
        %194 = vst [vmem:[#allocation2 + $0x10] sm:$0xff] 0.0
        %195 = vst [vmem:[#allocation2 + $0x18] sm:$0xff] 0.0
        %196 = vst [vmem:[#allocation2 + $0x20] sm:$0xff] 0.0
        %197 = vst [vmem:[#allocation2 + $0x28] sm:$0xff] 0.0
        %198 = vst [vmem:[#allocation2 + $0x30] sm:$0xff] 0.0
        %199 = vst [vmem:[#allocation2 + $0x38] sm:$0xff] 0.0
      $region32: #{bce_with_logits_loss.1} parent=27 // pred_fallthru
        _
      %v200 = vld [vmem:[%s175] sm:$0xff]
      %v201 = vld [vmem:[%s175 + $0x8] sm:$0xff]
      %v202 = vld [vmem:[%s175 + $0x10] sm:$0xff]
      %v203 = vld [vmem:[%s175 + $0x18] sm:$0xff]
      %v204 = vld [vmem:[%s175 + $0x20] sm:$0xff]
      %v205 = vld [vmem:[%s175 + $0x28] sm:$0xff]
      %v206 = vld [vmem:[%s175 + $0x30] sm:$0xff]
      %v207 = vld [vmem:[%s175 + $0x38] sm:$0xff]
      %v208 = vld [vmem:[%s182] sm:$0xff]
      %v209 = vld [vmem:[%s182 + $0x8] sm:$0xff]
      %v210 = vld [vmem:[%s182 + $0x10] sm:$0xff]
      %v211 = vld [vmem:[%s182 + $0x18] sm:$0xff]
      %v212 = vld [vmem:[%s182 + $0x20] sm:$0xff]
      %v213 = vld [vmem:[%s182 + $0x28] sm:$0xff]
      %v214 = vld [vmem:[%s182 + $0x30] sm:$0xff]
      %v215 = vld [vmem:[%s182 + $0x38] sm:$0xff]
      %v216 = vmax.f32 %v200, 0.0
      %v217 = vmax.f32 %v201, 0.0
      %v218 = vmax.f32 %v202, 0.0
      %v219 = vmax.f32 %v203, 0.0
      %v220 = vmax.f32 %v204, 0.0
      %v221 = vmax.f32 %v205, 0.0
      %v222 = vmax.f32 %v206, 0.0
      %v223 = vmax.f32 %v207, 0.0
      %v224 = vmul.f32 %v200, %v208
      %v225 = vmul.f32 %v201, %v209
      %v226 = vmul.f32 %v202, %v210
      %v227 = vmul.f32 %v203, %v211
      %v228 = vmul.f32 %v204, %v212
      %v229 = vmul.f32 %v205, %v213
      %v230 = vmul.f32 %v206, %v214
      %v231 = vmul.f32 %v207, %v215
      %v232 = vsub.f32 %v216, %v224
      %v233 = vsub.f32 %v217, %v225
      %v234 = vsub.f32 %v218, %v226
      %v235 = vsub.f32 %v219, %v227
      %v236 = vsub.f32 %v220, %v228
      %v237 = vsub.f32 %v221, %v229
      %v238 = vsub.f32 %v222, %v230
      %v239 = vsub.f32 %v223, %v231
      %v240 = vand.u32 2147483647, %v200
      %v241 = vand.u32 2147483647, %v201
      %v242 = vand.u32 2147483647, %v202
      %v243 = vand.u32 2147483647, %v203
      %v244 = vand.u32 2147483647, %v204
      %v245 = vand.u32 2147483647, %v205
      %v246 = vand.u32 2147483647, %v206
      %v247 = vand.u32 2147483647, %v207
      %v248 = vsub.f32 0.0, %v240
      %v249 = vsub.f32 0.0, %v241
      %v250 = vsub.f32 0.0, %v242
      %v251 = vsub.f32 0.0, %v243
      %v252 = vsub.f32 0.0, %v244
      %v253 = vsub.f32 0.0, %v245
      %v254 = vsub.f32 0.0, %v246
      %v255 = vsub.f32 0.0, %v247
      %v256 = vmul.f32 %v248, 1.442695
      %v257 = vpow.pop %v256
      %v258 = vmul.f32 %v249, 1.442695
      %v259 = vpow.pop %v258
      %v260 = vmul.f32 %v250, 1.442695
      %v261 = vpow.pop %v260
      %v262 = vmul.f32 %v251, 1.442695
      %v263 = vpow.pop %v262
      %v264 = vmul.f32 %v252, 1.442695
      %v265 = vpow.pop %v264
      %v266 = vmul.f32 %v253, 1.442695
      %v267 = vpow.pop %v266
      %v268 = vmul.f32 %v254, 1.442695
      %v269 = vpow.pop %v268
      %v270 = vmul.f32 %v255, 1.442695
      %v271 = vpow.pop %v270
      %v272 = vadd.f32 %v257, 1.0
      %v273 = vadd.f32 %v259, 1.0
      %v274 = vadd.f32 %v261, 1.0
      %v275 = vadd.f32 %v263, 1.0
      %v276 = vadd.f32 %v265, 1.0
      %v277 = vadd.f32 %v267, 1.0
      %v278 = vadd.f32 %v269, 1.0
      %v279 = vadd.f32 %v271, 1.0
      %v280 = vlog2.pop %v272
      %v281 = vmul.f32 %v280, 0.6931472
      %v282 = vlog2.pop %v273
      %v283 = vmul.f32 %v282, 0.6931472
      %v284 = vlog2.pop %v274
      %v285 = vmul.f32 %v284, 0.6931472
      %v286 = vlog2.pop %v275
      %v287 = vmul.f32 %v286, 0.6931472
      %v288 = vlog2.pop %v276
      %v289 = vmul.f32 %v288, 0.6931472
      %v290 = vlog2.pop %v277
      %v291 = vmul.f32 %v290, 0.6931472
      %v292 = vlog2.pop %v278
      %v293 = vmul.f32 %v292, 0.6931472
      %v294 = vlog2.pop %v279
      %v295 = vmul.f32 %v294, 0.6931472
      %v296 = vadd.f32 %v232, %v281
      %v297 = vadd.f32 %v233, %v283
      %v298 = vadd.f32 %v234, %v285
      %v299 = vadd.f32 %v235, %v287
      %v300 = vadd.f32 %v236, %v289
      %v301 = vadd.f32 %v237, %v291
      %v302 = vadd.f32 %v238, %v293
      %v303 = vadd.f32 %v239, %v295
      %v304 = vld [vmem:[#allocation2] sm:$0xff]
      %v305 = vld [vmem:[#allocation2 + $0x8] sm:$0xff]
      %v306 = vld [vmem:[#allocation2 + $0x10] sm:$0xff]
      %v307 = vld [vmem:[#allocation2 + $0x18] sm:$0xff]
      %v308 = vld [vmem:[#allocation2 + $0x20] sm:$0xff]
      %v309 = vld [vmem:[#allocation2 + $0x28] sm:$0xff]
      %v310 = vld [vmem:[#allocation2 + $0x30] sm:$0xff]
      %v311 = vld [vmem:[#allocation2 + $0x38] sm:$0xff]
      %v312 = vadd.f32 %v304, %v296
      %v313 = vadd.f32 %v305, %v297
      %v314 = vadd.f32 %v306, %v298
      %v315 = vadd.f32 %v307, %v299
      %v316 = vadd.f32 %v308, %v300
      %v317 = vadd.f32 %v309, %v301
      %v318 = vadd.f32 %v310, %v302
      %v319 = vadd.f32 %v311, %v303
      %320 = vst [vmem:[#allocation2] sm:$0xff] %v312
      %321 = vst [vmem:[#allocation2 + $0x8] sm:$0xff] %v313
      %322 = vst [vmem:[#allocation2 + $0x10] sm:$0xff] %v314
      %323 = vst [vmem:[#allocation2 + $0x18] sm:$0xff] %v315
      %324 = vst [vmem:[#allocation2 + $0x20] sm:$0xff] %v316
      %325 = vst [vmem:[#allocation2 + $0x28] sm:$0xff] %v317
      %326 = vst [vmem:[#allocation2 + $0x30] sm:$0xff] %v318
      %327 = vst [vmem:[#allocation2 + $0x38] sm:$0xff] %v319
      // Predicated region
      $region33: #{bce_with_logits_loss.1} parent=27 // pred_check
        %p328 = pneg %p188
      $region34: #{bce_with_logits_loss.1} parent=27 // pred_check_branch
        %330 = sbr.rel (%p328) target = $region36
      $region35: #{bce_with_logits_loss.1} parent=27 // pred_region
        %v331 = vld [vmem:[#allocation2] sm:$0xff]
        %v332 = vld [vmem:[#allocation2 + $0x8] sm:$0xff]
        %v333 = vld [vmem:[#allocation2 + $0x10] sm:$0xff]
        %v334 = vld [vmem:[#allocation2 + $0x18] sm:$0xff]
        %v335 = vld [vmem:[#allocation2 + $0x20] sm:$0xff]
        %v336 = vld [vmem:[#allocation2 + $0x28] sm:$0xff]
        %v337 = vld [vmem:[#allocation2 + $0x30] sm:$0xff]
        %v338 = vld [vmem:[#allocation2 + $0x38] sm:$0xff]
        %v339 = vadd.f32 %v331, %v332
        %v340 = vadd.f32 %v339, %v333
        %v341 = vadd.f32 %v340, %v334
        %v342 = vadd.f32 %v341, %v335
        %v343 = vadd.f32 %v342, %v336
        %v344 = vadd.f32 %v343, %v337
        %v345 = vadd.f32 %v344, %v338
        %346 = vadd.xlane.f32.xlu0 %v345
        %v347 = vpop.xlane.xlu0 %346
        %v348 = vrot.slane %v347, 4
        %v349 = vadd.f32 %v347, %v348
        %v350 = vrot.slane %v349, 2
        %v351 = vadd.f32 %v349, %v350
        %v352 = vrot.slane %v351, 1
        %v353 = vadd.f32 %v351, %v352
        %s354 = vtos %v353
        %v355 = vstv %s354
        %356 = vst [vmem:[%s187] sm:$0xff] %v355
      $region36: #{bce_with_logits_loss.1} parent=27 // pred_fallthru
        _
      %p357 = scmp.lt.s32.totalorder %s17, 1
      %s358 = scalar_select %p357, %s17, 1
      %s359 = smul.addr %s358, 8
      %s360 = scalar_lea.vmem %s2, %s359
      // Predicated region
      $region37: #{bce_with_logits_loss.1} parent=27 // pred_check
        %p361 = pneg %p99
      $region38: #{bce_with_logits_loss.1} parent=27 // pred_check_branch
        %363 = sbr.rel (%p361) target = $region40
      $region39: #{bce_with_logits_loss.1} parent=27 // pred_region
        _
      $region40: #{bce_with_logits_loss.1} parent=27 // pred_fallthru
        _
    $region28: #{bce_with_logits_loss.1} parent=5 // pred_fallthru
      _
    %p364 = scmp.le.s32.totalorder 2, %s8
    // Predicated region
    $region41: #{bce_with_logits_loss.1} parent=5 // pred_check
      %p365 = pneg %p364
    $region42: #{bce_with_logits_loss.1} parent=5 // pred_check_branch
      %367 = sbr.rel (%p365) target = $region44
    $region43: #{bce_with_logits_loss.1} parent=5 // pred_region
      %s368 = ssub.s32 %s8, 2
      // Predicated region
      $region45: #{bce_with_logits_loss.1} parent=43 // pred_check
        %p369 = pneg %p105
      $region46: #{bce_with_logits_loss.1} parent=43 // pred_check_branch
        %371 = sbr.rel (%p369) target = $region48
      $region47: #{bce_with_logits_loss.1} parent=43 // pred_region
        %p372 = scmp.lt.s32.totalorder %s19, 1
        %s373 = scalar_select %p372, %s19, 1
        %s374 = smul.addr %s373, 8
        %s375 = scalar_lea.vmem %s2, %s374
      $region48: #{bce_with_logits_loss.1} parent=43 // pred_fallthru
        _
    $region44: #{bce_with_logits_loss.1} parent=5 // pred_fallthru
      _
  $region6: #{bce_with_logits_loss.1} parent=0 // loop_footer
    %s12 = sadd.s32 1, %s8
  $region7: #{bce_with_logits_loss.1} parent=0 // loop_footer_branch
    %7 = sbr.rel target = $region3
  $region8: #{bce_with_logits_loss.1} parent=0 // loop_exit
    _

</llo_original>
